<compile_context>
chip_gen: v7x
topology: tpu7x:2x2x1
jax: 0.10.0
libtpu: 0.0.40
codegen_flags: <defaults>
</compile_context>

<pallas_src>
import functools
import math

import jax
import jax.numpy as jnp
from jax import lax
from jax.experimental import pallas as pl
from jax.experimental.pallas import tpu as pltpu


# ---------------------------------------------------------------------------
# Kernel: one XLU rotate per block.  axis=1 is the flattened lane axis in the
# 2-D path and the rolled (sublane) axis in the 3-D path.  roll-by-0 is the
# identity, and the zero-shift case is bypassed at the wrapper level anyway,
# so no pl.when split is needed.
# ---------------------------------------------------------------------------
def _roll_kernel(shift_ref, x_ref, o_ref):
    o_ref[...] = pltpu.roll(x_ref[...], shift_ref[0], axis=1)


# ---------------------------------------------------------------------------
# Tiling policy.
# ---------------------------------------------------------------------------
_TARGET_BLOCK_BYTES = 4 * 1024 * 1024   # ~4 MiB per block (review: 4-6 MiB)
_MAX_2D_BLOCK_BYTES = 8 * 1024 * 1024   # above this, switch to the 3-D layout
_SUBLANE = {4: 8, 2: 16, 1: 32}         # sublane tile per dtype itemsize


def _sublane_multiple(itemsize):
    return _SUBLANE.get(itemsize, 8)


def _pick_tile_rows(lead, row_bytes, itemsize,
                    target_bytes=_TARGET_BLOCK_BYTES, min_steps=4):
    """Rows per block: sublane-aligned, <= byte budget, and small enough that
    the grid has >= min_steps steps (double-buffering + v7x megacore), unless
    there are too few rows to split."""
    sub = _sublane_multiple(itemsize)
    if lead < 2 * sub:
        return lead                      # can't split into sublane-aligned tiles
    by_bytes = max(sub, (target_bytes // max(row_bytes, 1)) // sub * sub)
    by_steps = max(sub, (lead // min_steps) // sub * sub)
    return int(min(by_bytes, by_steps))  # both are multiples of sub, <= lead


def _pick_tiles_3d(lead, roll_len, trail, itemsize,
                   target_bytes=_TARGET_BLOCK_BYTES, min_steps=4):
    """(tile_rows, tile_T) for the (rows, L, T) layout; full L per block."""
    sub = _sublane_multiple(itemsize)
    if trail <= 128:
        tile_t = trail
    else:
        per_lane_col = sub * roll_len * itemsize
        budget_t = (target_bytes // max(per_lane_col, 1)) // 128 * 128
        tile_t = int(max(128, min(budget_t, (trail // 128) * 128)))
    tile_rows = _pick_tile_rows(lead, roll_len * tile_t * itemsize, itemsize,
                                target_bytes, min_steps)
    return tile_rows, tile_t


def _vmem_limit(block_bytes):
    # in + out, each double-buffered, plus headroom for compiler scratch.
    need = 4 * block_bytes + (4 << 20)
    return int(min(max(need, 32 << 20), 64 << 20))


# ---------------------------------------------------------------------------
# Wrapper.
# ---------------------------------------------------------------------------
@functools.partial(jax.jit, static_argnames=("axis",))
def roll_pallas(image, shift, axis):
    """Circular roll of `image` by dynamic integer `shift` along static `axis`."""
    axis = axis % image.ndim
    shape = image.shape
    roll_len = shape[axis]                       # L  (rolled axis, e.g. H)
    lead = math.prod(shape[:axis]) or 1          # R  (rows, e.g. N*C)
    trail = math.prod(shape[axis + 1:]) or 1     # T  (e.g. W)
    itemsize = image.dtype.itemsize

    # Positive residual shift along the rolled axis (jnp.mod matches torch.roll).
    km = jnp.mod(shift.astype(jnp.int32), jnp.int32(roll_len))

    def _roll(img):
        lanes = roll_len * trail
        sub = _sublane_multiple(itemsize)

        if sub * lanes * itemsize <= _MAX_2D_BLOCK_BYTES:
            # ---- 2-D path: layout-preserving flatten, dynamic LANE rotate. ----
            # roll(img, s, axis) == roll(img.reshape(R, L*T), (s mod L)*T, -1)
            x2 = img.reshape(lead, lanes)
            tile_rows = _pick_tile_rows(lead, lanes * itemsize, itemsize)
            block_bytes = tile_rows * lanes * itemsize
            k = jnp.reshape(km * jnp.int32(trail), (1,))

            out2 = pl.pallas_call(
                _roll_kernel,
                out_shape=jax.ShapeDtypeStruct((lead, lanes), img.dtype),
                grid_spec=pltpu.PrefetchScalarGridSpec(
                    num_scalar_prefetch=1,
                    grid=(pl.cdiv(lead, tile_rows),),
                    in_specs=[pl.BlockSpec((tile_rows, lanes),
                                           lambda i, s: (i, 0))],
                    out_specs=pl.BlockSpec((tile_rows, lanes),
                                           lambda i, s: (i, 0)),
                ),
                compiler_params=pltpu.CompilerParams(
                    dimension_semantics=("parallel",),
                    vmem_limit_bytes=_vmem_limit(block_bytes)),
                cost_estimate=pl.CostEstimate(
                    flops=0, transcendentals=0,
                    bytes_accessed=2 * lead * lanes * itemsize),
            )(k, x2)
            return out2.reshape(shape)

        # ---- 3-D path (huge H*W): keep (rows, L, T), dynamic SUBLANE rotate ----
        # along the full-L axis by (shift mod L); T is tiled in 128-lane
        # multiples so the roll never wraps across lane tiles and VMEM stays
        # bounded (v7x has only 64 MiB).
        x3 = img.reshape(lead, roll_len, trail)
        tile_rows, tile_t = _pick_tiles_3d(lead, roll_len, trail, itemsize)
        block_bytes = tile_rows * roll_len * tile_t * itemsize
        k = jnp.reshape(km, (1,))

        out3 = pl.pallas_call(
            _roll_kernel,
            out_shape=jax.ShapeDtypeStruct((lead, roll_len, trail), img.dtype),
            grid_spec=pltpu.PrefetchScalarGridSpec(
                num_scalar_prefetch=1,
                grid=(pl.cdiv(lead, tile_rows), pl.cdiv(trail, tile_t)),
                in_specs=[pl.BlockSpec((tile_rows, roll_len, tile_t),
                                       lambda i, t, s: (i, 0, t))],
                out_specs=pl.BlockSpec((tile_rows, roll_len, tile_t),
                                       lambda i, t, s: (i, 0, t)),
            ),
            compiler_params=pltpu.CompilerParams(
                dimension_semantics=("parallel", "parallel"),
                vmem_limit_bytes=_vmem_limit(block_bytes)),
            cost_estimate=pl.CostEstimate(
                flops=0, transcendentals=0,
                bytes_accessed=2 * lead * roll_len * trail * itemsize),
        )(k, x3)
        return out3.reshape(shape)

    # Wrapper-level bypass: effective shift 0 (pct_apply miss, shift == 0, or
    # shift a multiple of L) skips the HBM round trip entirely.
    return lax.cond(km == 0, lambda img: img, _roll, image)


# ---------------------------------------------------------------------------
# Module-faithful randomness.
# ---------------------------------------------------------------------------
def sample_shift(key, px, pct_apply):
    """Reproduces the module's randomness exactly.

    NOTE: faithful to the PyTorch module's expression
        translate_x = px[0] + rand() * (px[0] - px[1])
    (for px=(2, 6) this yields values in (-2, 2], NOT [2, 6]), and the cast to
    int32 truncates toward zero, matching torch's .int().
    """
    k_apply, k_shift = jax.random.split(key)
    apply = jax.random.uniform(k_apply, ()) < pct_apply
    translate = px[0] + jax.random.uniform(k_shift, ()) * (px[0] - px[1])
    shift = translate.astype(jnp.int32)
    # "else: return image" is equivalent to rolling by 0 pixels.
    return jnp.where(apply, shift, jnp.int32(0))


def random_roll_px(image, key, px=(2, 6), axis=2, pct_apply=0.8):
    assert len(px) == 2
    shift = sample_shift(key, px, pct_apply)
    return roll_pallas(image, shift, axis=axis), shift


# ---------------------------------------------------------------------------
# Self-test.
# ---------------------------------------------------------------------------
if __name__ == "__main__":
    key = jax.random.PRNGKey(0)
    k_img, k_aug = jax.random.split(key)

    # Module-spec shape: NCHW, roll along H (axis=2).
    image = jax.random.normal(k_img, (2, 4, 16, 16), dtype=jnp.float32)
    axis = 2

    # Deterministic checks against jnp.roll (zero, negative, positive, > H).
    for s in (-3, 0, 2, 5, 17):
        out = jax.block_until_ready(roll_pallas(image, jnp.int32(s), axis=axis))
        ref = jnp.roll(image, s, axis)
        assert out.shape == image.shape and out.dtype == image.dtype
        assert jnp.allclose(out, ref), f"Pallas roll mismatch at shift={s}"

    # Larger f32 case: multi-step grid (pipelined DMAs, megacore-shardable rows).
    big = jax.random.normal(jax.random.PRNGKey(1), (8, 16, 32, 32), jnp.float32)
    out = jax.block_until_ready(roll_pallas(big, jnp.int32(7), axis=2))
    assert jnp.allclose(out, jnp.roll(big, 7, 2)), "multi-step grid mismatch"

    # Row count not divisible by the tile -> masked partial last block.
    odd = jax.random.normal(jax.random.PRNGKey(2), (5, 4, 32, 32), jnp.float32)
    out = jax.block_until_ready(roll_pallas(odd, jnp.int32(-9), axis=2))
    assert jnp.allclose(out, jnp.roll(odd, -9, 2)), "partial-block mismatch"

    # Module-faithful randomized path (apply gate + pixel-shift draw).
    out, shift = random_roll_px(image, k_aug, px=(2, 6), axis=axis, pct_apply=0.8)
    out = jax.block_until_ready(out)
    ref = jnp.roll(image, int(shift), axis)
    assert out.shape == image.shape and out.dtype == image.dtype
    assert jnp.allclose(out, ref), "Pallas roll does not match jnp.roll reference"

    print("KERNEL_OK")
</pallas_src>

<mosaic_0001>
module attributes {stable_mosaic.version = 11 : i64} {
  func.func @_roll_kernel(%arg0: i32, %arg1: memref<1xi32, #tpu.memory_space<smem>>, %arg2: memref<8x256xf32, #tpu.memory_space<vmem>>, %arg3: memref<8x256xf32, #tpu.memory_space<vmem>>) attributes {dimension_semantics = [#tpu.dimension_semantics<parallel>], iteration_bounds = array<i64: 1>, scalar_prefetch = 1 : i64, scratch_operands = 0 : i64, tpu.core_type = #tpu.core_type<tc>, window_params = [{transform_indices = @transform_0, window_bounds = array<i64: 8, 256>}, {transform_indices = @transform_1, window_bounds = array<i64: 8, 256>}]} {
    %c0 = arith.constant 0 : index
    %c0_0 = arith.constant 0 : index
    %0 = vector.load %arg2[%c0, %c0_0] : memref<8x256xf32, #tpu.memory_space<vmem>>, vector<8x256xf32>
    %c0_1 = arith.constant 0 : index
    %1 = memref.load %arg1[%c0_1] : memref<1xi32, #tpu.memory_space<smem>>
    %2 = tpu.dynamic_rotate %0 by %1 dim 1 : vector<8x256xf32>, i32 -> vector<8x256xf32>
    %c0_2 = arith.constant 0 : index
    %c0_3 = arith.constant 0 : index
    %3 = vector.load %arg3[%c0_2, %c0_3] : memref<8x256xf32, #tpu.memory_space<vmem>>, vector<8x256xf32>
    tpu.vector_store %arg3[%c0_2, %c0_3], %2 {strides = array<i32>} : memref<8x256xf32, #tpu.memory_space<vmem>>, vector<8x256xf32>,
    return
  }
  func.func @transform_0(%arg0: i32, %arg1: memref<1xi32, #tpu.memory_space<smem>>) -> (i32, i32) {
    %c0_i32 = arith.constant 0 : i32
    %c0_i32_0 = arith.constant 0 : i32
    return %arg0, %c0_i32 : i32, i32
  }
  func.func @transform_1(%arg0: i32, %arg1: memref<1xi32, #tpu.memory_space<smem>>) -> (i32, i32) {
    %c0_i32 = arith.constant 0 : i32
    %c0_i32_0 = arith.constant 0 : i32
    return %arg0, %c0_i32 : i32, i32
  }
}

</mosaic_0001>

<llo_original>
// kernel: branch_0_fun.1
$region0: #{branch_0_fun.1}
  #allocation0 [shape = 'u32[]', space=smem, size = 0x4, offset = 0x4, fixed_abs, tag = 'smem constant byte address 0x4 - core index']
  #allocation1 [shape = 'u32[144,128]{1,0:T(1,128)}', space=vmem, size = 0x12000, scoped, tag = 'internal scratch']
  #allocation2 [shape = 's32[1]{0}', space=sflag, size = 0x4, scoped, tag = 'scoped memory for branch_0_fun.1']
  #allocation3 [shape = 's32[1]{0:T(128)S(6)}', space=smem, size = 0x200, scoped, tag = 'prefetched SMEM operand 0']
  %s0 = inlined_call_operand.<no memory space> [shape: s32[1], index: 0, kind: input, shape index: {}]
  %s1 = inlined_call_operand.vmem [shape: f32[8,256], index: 1, kind: input, shape index: {}]
  %s2 = inlined_call_operand.vmem [shape: f32[8,256], index: 2, kind: output, shape index: {}]
  %s3 = sld [smem:[#allocation0]]
  $region14: #{branch_0_fun.1} parent=0
    _
  %s5 = ssub.s32 1, %s3
  %s6 = scalar_select 0, %s5, %s3
  %7 = sst [smem:[#allocation3]] %s0
  // Predicated region
  $region2: #{branch_0_fun.1} parent=0 // pred_check
    _
  $region3: #{branch_0_fun.1} parent=0 // pred_check_branch
    %9 = sbr.rel (0) target = $region5
  $region4: #{branch_0_fun.1} parent=0 // pred_region
    _
  $region5: #{branch_0_fun.1} parent=0 // pred_fallthru
    _
  %v10 = vld [vmem:[%s1] sm:$0xff]
  %v11 = vld [vmem:[%s1 + $0x8] sm:$0xff]
  %s12 = sld [smem:[#allocation3]]
  %s13 = sand.u32 %s12, 255
  %s14 = sand.u32 %s13, 127
  %s15 = sshrl.u32 %s13, 7
  %16 = vrot.lane.b32.xlu0 %v10, %s14
  %v17 = vpop.permute.xlu0 %16
  %18 = vrot.lane.b32.xlu0 %v11, %s14
  %v19 = vpop.permute.xlu0 %18
  %v20 = vstv %s14
  %v21 = vlaneseq
  %v22 = vand.u32 %v21, 127
  %vm23 = vcmp.lt.s32.totalorder %v22, %v20
  %v24 = vsel %vm23, %v17, %v19
  %v25 = vsel %vm23, %v19, %v17
  %s26 = sand.u32 %s15, 1
  %v27 = vstv %s26
  %vm28 = vcmp.ne.s32.totalorder %v27, 0
  %v29 = vsel %vm28, %v24, %v25
  %v30 = vsel %vm28, %v25, %v24
  %31 = vst [vmem:[%s2] sm:$0xff] %v29
  %32 = vst [vmem:[%s2 + $0x8] sm:$0xff] %v30
  // Predicated region
  $region6: #{branch_0_fun.1} parent=0 // pred_check
    _
  $region7: #{branch_0_fun.1} parent=0 // pred_check_branch
    %34 = sbr.rel (0) target = $region9
  $region8: #{branch_0_fun.1} parent=0 // pred_region
    _
  $region9: #{branch_0_fun.1} parent=0 // pred_fallthru
    _
  // Predicated region
  $region10: #{branch_0_fun.1} parent=0 // pred_check
    _
  $region11: #{branch_0_fun.1} parent=0 // pred_check_branch
    %36 = sbr.rel (0) target = $region13
  $region12: #{branch_0_fun.1} parent=0 // pred_region
    _
  $region13: #{branch_0_fun.1} parent=0 // pred_fallthru
    _

</llo_original>
